<compile_context>
chip_gen: v7x
topology: tpu7x:2x2x1
jax: 0.10.0
libtpu: 0.0.40
codegen_flags: <defaults>
</compile_context>

<pallas_src>
import jax
import jax.numpy as jnp
import numpy as np
from jax.experimental import pallas as pl
from jax.experimental.pallas import tpu as pltpu

# ----------------------------- constants ------------------------------------
MAX_LEN = 80              # tokenizer(..., max_length=80)
BUF = 128                 # lane-aligned working width inside the kernel
MIN_ROWS = 16             # min padded batch: one full (16,128) int16 tile
NO_GRID_MAX_ROWS = 8192   # whole batch stays VMEM-resident up to here
GRID_BLOCK_ROWS = 2048    # rows per grid step on the large-batch fallback

UNK_ID = 0                # '<unk>'   (Llama convention)
BOS_ID = 1                # '<s>'
EOS_ID = 2                # '</s>'    (add_eos_token=True)
PAD_ID = 3                # pad_token = ' '  ->  '▁'

SPECIAL_ID_TO_TOKEN = {UNK_ID: "<unk>", BOS_ID: "<s>", EOS_ID: "</s>", PAD_ID: "▁"}


# ------------------------- synthetic "SentencePiece" ------------------------
# TODO(synk): real LlamaTokenizer (SentencePiece BPE) has no Pallas equivalent;
# a deterministic word->id table stands in for it.
_WORDS = [
    "summarize:", "the", "quick", "brown", "fox", "jumps", "over",
    "lazy", "dog", "video", "shows", "a", "person", "running",
]
_VOCAB = {w: 10 + i for i, w in enumerate(_WORDS)}
_ID_TO_TOKEN = {i: "▁" + w for w, i in _VOCAB.items()}
_ID_TO_TOKEN.update(SPECIAL_ID_TO_TOKEN)


def synthetic_word_tokenize(text: str):
    """Map whitespace-split words to ids; out-of-vocab words -> <unk>."""
    return [_VOCAB.get(w, UNK_ID) for w in text.split()]


# ------------------------------ Pallas kernel --------------------------------
def tokenizer_kernel(raw_ref, out_ref):
    # raw_ref : VMEM (rows, BUF) int16
    #           lane 0        = number of raw content tokens m (<= BUF-1)
    #           lanes 1..m    = content token ids
    # out_ref : VMEM (rows, BUF) int16
    #           BOS + content[:n] + EOS + PAD..., n = min(m, MAX_LEN-2);
    #           only the first MAX_LEN lanes are meaningful to the caller.
    raw = raw_ref[...].astype(jnp.int32)                       # (rows, BUF)
    # truncation=True: keep room for BOS + EOS inside max_length.
    # Read the per-row length from lane 0 (it is replaced by BOS below).
    n = jnp.minimum(raw[:, 0:1], MAX_LEN - 2)                  # (rows, 1)
    pos = jax.lax.broadcasted_iota(jnp.int32, raw.shape, 1)    # lane index

    # lane 0 -> BOS, lanes 1..n -> content, lane n+1 -> EOS, rest -> PAD.
    # n <= MAX_LEN-2 so every lane >= MAX_LEN already falls into the PAD branch.
    ids = jnp.where(
        pos == 0, BOS_ID,
        jnp.where(pos <= n, raw,
                  jnp.where(pos == n + 1, EOS_ID, PAD_ID)))
    out_ref[...] = ids.astype(out_ref.dtype)


@jax.jit
def run_tokenizer_kernel(raw_buf: jnp.ndarray):
    """raw_buf: (B, BUF) int16, B a power of two >= MIN_ROWS.

    Returns (B, BUF) int16 input_ids (first MAX_LEN lanes valid per row).
    """
    B = raw_buf.shape[0]
    out_shape = jax.ShapeDtypeStruct((B, BUF), jnp.int16)

    if B <= NO_GRID_MAX_ROWS:
        # Whole batch VMEM-resident: no grid, no per-step pipeline overhead.
        # Worst case in+out = 8192*128*2B*2 = 4 MiB, far under the scoped VMEM
        # defaults on v5e (16 MiB) / v6e / v7x (32 MiB).
        return pl.pallas_call(
            tokenizer_kernel,
            out_shape=out_shape,
            in_specs=[pl.BlockSpec(memory_space=pltpu.MemorySpace.VMEM)],
            out_specs=pl.BlockSpec(memory_space=pltpu.MemorySpace.VMEM),
            compiler_params=pltpu.CompilerParams(
                vmem_limit_bytes=16 * 1024 * 1024),
        )(raw_buf)

    # Very large batches: 1-D "parallel" grid over 2048-row blocks (>= 2 steps
    # by construction, so a v7x chip can split them across its two TCs; near
    # neutral on the single-TC v5e/v6e).  Per step: 512 KiB in + 512 KiB out,
    # double-buffered -> ~2 MiB, well inside every generation's scoped VMEM.
    return pl.pallas_call(
        tokenizer_kernel,
        out_shape=out_shape,
        grid=(B // GRID_BLOCK_ROWS,),
        in_specs=[pl.BlockSpec((GRID_BLOCK_ROWS, BUF), lambda i: (i, 0))],
        out_specs=pl.BlockSpec((GRID_BLOCK_ROWS, BUF), lambda i: (i, 0)),
        compiler_params=pltpu.CompilerParams(
            dimension_semantics=("parallel",),
            vmem_limit_bytes=8 * 1024 * 1024),
    )(raw_buf)


# --------------------------- host-side packing --------------------------------
def _padded_batch(B: int) -> int:
    """Bucket B to a power of two (min MIN_ROWS) to bound jit recompiles."""
    return max(MIN_ROWS, 1 << (max(B, 1) - 1).bit_length())


def pack_texts(texts, Bp=None):
    """Pack texts into a (Bp, BUF) int16 buffer: lane 0 = length, 1.. = ids."""
    B = len(texts)
    if Bp is None:
        Bp = _padded_batch(B)
    raw = np.zeros((Bp, BUF), dtype=np.int16)
    for b, text in enumerate(texts):
        content_ids = synthetic_word_tokenize("summarize: " + text)
        m = min(len(content_ids), BUF - 1)        # lane 0 holds the length
        raw[b, 0] = m
        raw[b, 1:1 + m] = np.asarray(content_ids[:m], dtype=np.int16)
    return raw


# --------------------------- module-level forward ----------------------------
def tokenize_batch(texts):
    """Batched mirror of Tokenizer.forward: one pallas_call for all texts.

    Returns a list of (input_ids (1, MAX_LEN) int64, token_lst) per text.
    """
    B = len(texts)
    raw = pack_texts(texts)

    out = jax.block_until_ready(run_tokenizer_kernel(jnp.asarray(raw)))
    ids_np = np.asarray(out)[:B, :MAX_LEN].astype(np.int64)   # one D2H transfer
    keep_np = ids_np != UNK_ID         # mask derived on host; no device plane

    # TODO(synk): convert_ids_to_tokens + list filtering is Python string glue.
    results = []
    for b in range(B):
        tokens = [_ID_TO_TOKEN.get(int(i), "<unk>") for i in ids_np[b]]
        token_lst = [t for t, keep in zip(tokens, keep_np[b]) if keep]
        results.append((ids_np[b:b + 1].copy(), token_lst))
    return results


def tokenizer_forward(text: str):
    """Mirror of Tokenizer.forward(text) -> (input_ids, token_lst)."""
    return tokenize_batch([text])[0]


# ------------------------------- reference -----------------------------------
def reference_forward(text: str):
    content_ids = synthetic_word_tokenize("summarize: " + text)
    n = min(len(content_ids), MAX_LEN - 2)
    seq = [BOS_ID] + list(content_ids[:n]) + [EOS_ID]
    seq = seq + [PAD_ID] * (MAX_LEN - len(seq))
    ids = np.asarray(seq, dtype=np.int64)[None, :]
    tokens = [_ID_TO_TOKEN.get(int(i), "<unk>") for i in ids[0]]
    token_lst = [t for t in tokens if t != "<unk>"]
    return ids, token_lst


if __name__ == "__main__":
    # Deterministic example texts built with PRNGKey(0): random words from the
    # tiny vocab plus occasional out-of-vocab words to exercise <unk> filtering.
    key = jax.random.PRNGKey(0)
    pool = _WORDS[1:]  # exclude the "summarize:" prefix token

    def make_texts(k, n_texts, n_words, oov_every):
        idx = np.asarray(jax.random.randint(k, (n_texts, n_words), 0, len(pool)))
        texts = []
        for b in range(n_texts):
            words = [pool[int(i)] for i in idx[b]]
            if oov_every and b % oov_every == 0:
                words.append("zqxunknownword")
            texts.append(" ".join(words))
        return texts

    # --- Small batch (pads to 16 rows -> single-tile, no-grid path). --------
    key, sub = jax.random.split(key)
    small_texts = make_texts(sub, 3, 8, oov_every=2)

    results = tokenize_batch(small_texts)
    for text, (input_ids, token_lst) in zip(small_texts, results):
        exp_ids, exp_tokens = reference_forward(text)
        np.testing.assert_array_equal(np.asarray(input_ids), exp_ids)
        assert input_ids.shape == (1, MAX_LEN)
        assert "<unk>" not in token_lst
        assert token_lst == exp_tokens

    # --- Mixed batch including a long text exercising truncation. -----------
    key, sub = jax.random.split(key)
    mixed_texts = make_texts(sub, 9, 8, oov_every=3)
    key, sub = jax.random.split(key)
    long_idx = np.asarray(jax.random.randint(sub, (100,), 0, len(pool)))
    mixed_texts.append(" ".join(pool[int(i)] for i in long_idx))

    for text, (input_ids, token_lst) in zip(mixed_texts, tokenize_batch(mixed_texts)):
        exp_ids, exp_tokens = reference_forward(text)
        np.testing.assert_array_equal(np.asarray(input_ids), exp_ids)
        assert "<unk>" not in token_lst
        assert token_lst == exp_tokens

    # --- Grid-path check: tile the small packed rows past NO_GRID_MAX_ROWS. --
    small_raw = pack_texts(small_texts)                       # (16, 128)
    reps = (2 * NO_GRID_MAX_ROWS) // small_raw.shape[0]       # -> 16384 rows
    big_raw = np.tile(small_raw, (reps, 1))
    big_out = jax.block_until_ready(run_tokenizer_kernel(jnp.asarray(big_raw)))
    small_out = jax.block_until_ready(run_tokenizer_kernel(jnp.asarray(small_raw)))
    np.testing.assert_array_equal(
        np.asarray(big_out).reshape(reps, small_raw.shape[0], BUF),
        np.broadcast_to(np.asarray(small_out), (reps,) + small_out.shape))

    # --- Single-text path mirrors the original module's forward(text). ------
    input_ids, token_lst = tokenizer_forward(small_texts[0])
    exp_ids, exp_tokens = reference_forward(small_texts[0])
    np.testing.assert_array_equal(np.asarray(input_ids), exp_ids)
    assert token_lst == exp_tokens

    print("KERNEL_OK")
</pallas_src>

<mosaic_0001>
module attributes {stable_mosaic.version = 11 : i64} {
  func.func @tokenizer_kernel(%arg0: memref<16x128xi16, #tpu.memory_space<vmem>>, %arg1: memref<16x128xi16, #tpu.memory_space<vmem>>) attributes {dimension_semantics = [], scalar_prefetch = 0 : i64, scratch_operands = 0 : i64, tpu.core_type = #tpu.core_type<tc>} {
    %c0 = arith.constant 0 : index
    %c0_0 = arith.constant 0 : index
    %0 = vector.load %arg0[%c0, %c0_0] : memref<16x128xi16, #tpu.memory_space<vmem>>, vector<16x128xi16>
    %1 = arith.extsi %0 : vector<16x128xi16> to vector<16x128xi32>
    %2 = vector.extract_strided_slice %1 {offsets = [0, 0], sizes = [16, 1], strides = [1, 1]} : vector<16x128xi32> to vector<16x1xi32>
    %c78_i32 = arith.constant 78 : i32
    %3 = vector.broadcast %c78_i32 : i32 to vector<16x1xi32>
    %4 = arith.minsi %2, %3 : vector<16x1xi32>
    %5 = tpu.iota {dimensions = array<i32: 1>} : vector<16x128xi32>
    %c0_i32 = arith.constant 0 : i32
    %6 = vector.broadcast %c0_i32 : i32 to vector<16x128xi32>
    %7 = arith.cmpi eq, %5, %6 : vector<16x128xi32>
    %8 = vector.broadcast %4 : vector<16x1xi32> to vector<16x128xi32>
    %9 = arith.cmpi sle, %5, %8 : vector<16x128xi32>
    %c1_i32 = arith.constant 1 : i32
    %10 = vector.broadcast %c1_i32 : i32 to vector<16x1xi32>
    %11 = arith.addi %4, %10 : vector<16x1xi32>
    %12 = vector.broadcast %11 : vector<16x1xi32> to vector<16x128xi32>
    %13 = arith.cmpi eq, %5, %12 : vector<16x128xi32>
    %c2_i32 = arith.constant 2 : i32
    %c3_i32 = arith.constant 3 : i32
    %14 = vector.broadcast %c2_i32 : i32 to vector<16x128xi32>
    %15 = vector.broadcast %c3_i32 : i32 to vector<16x128xi32>
    %16 = arith.select %13, %14, %15 : vector<16x128xi1>, vector<16x128xi32>
    %17 = arith.select %9, %1, %16 : vector<16x128xi1>, vector<16x128xi32>
    %c1_i32_1 = arith.constant 1 : i32
    %18 = vector.broadcast %c1_i32_1 : i32 to vector<16x128xi32>
    %19 = arith.select %7, %18, %17 : vector<16x128xi1>, vector<16x128xi32>
    %20 = arith.trunci %19 : vector<16x128xi32> to vector<16x128xi16>
    %c0_2 = arith.constant 0 : index
    %c0_3 = arith.constant 0 : index
    %21 = vector.load %arg1[%c0_2, %c0_3] : memref<16x128xi16, #tpu.memory_space<vmem>>, vector<16x128xi16>
    tpu.vector_store %arg1[%c0_2, %c0_3], %20 {strides = array<i32>} : memref<16x128xi16, #tpu.memory_space<vmem>>, vector<16x128xi16>,
    return
  }
}

</mosaic_0001>

<llo_original>
// kernel: run_tokenizer_kernel.1
$region0: #{run_tokenizer_kernel.1}
  #allocation0 [shape = 'u32[]', space=smem, size = 0x4, offset = 0x4, fixed_abs, tag = 'smem constant byte address 0x4 - core index']
  #allocation1 [shape = 'u32[144,128]{1,0:T(1,128)}', space=vmem, size = 0x12000, scoped, tag = 'internal scratch']
  %s0 = inlined_call_operand.hbm [shape: s16[16,128], index: 0, kind: input, shape index: {}]
  %s1 = inlined_call_operand.hbm [shape: s16[16,128], index: 1, kind: output, shape index: {}]
  %s2 = sld [smem:[#allocation0]]
  $region18: #{run_tokenizer_kernel.1} parent=0
    _
  %s4 = ssub.s32 1, %s2
  %s5 = scalar_select 0, %s4, %s2
  $region1: #{run_tokenizer_kernel.1} parent=0
    #allocation2 [shape = 'u8[4096]{0}', space=vmem, size = 0x1000, scoped, tag = 'input window, operand 0, single buffered']
    #allocation3 [shape = 's32[1]{0}', space=sflag, size = 0x4, scoped, tag = 'scoped memory for run_tokenizer_kernel.1']
    #allocation4 [shape = 's32[1]{0}', space=sflag, size = 0x4, scoped, tag = 'scoped memory for run_tokenizer_kernel.1']
    #allocation5 [shape = 'u8[4096]{0}', space=vmem, size = 0x1000, scoped, tag = 'output window, operand 0, single buffered']
    %6 = vsyncpa [#allocation3], 0
    %7 = vsyncpa [#allocation4], 0
    // Predicated region
    $region2: #{run_tokenizer_kernel.1} parent=1 // pred_check
      _
    $region3: #{run_tokenizer_kernel.1} parent=1 // pred_check_branch
      %9 = sbr.rel (0) target = $region5
    $region4: #{run_tokenizer_kernel.1} parent=1 // pred_region
      %s11 = ssub.s32 128, 128
      %12 = vsyncadd [#allocation3], %s11
      %s13 = sshll.u32 [#allocation2], 4
      %s14 = int_to_ptr.vmem [resolvable:$true] %s13
      %19 = dma.hbm_to_vmem [thread:$0]  %s0, 128, %s14, [#allocation3], 64, 64, 4
    $region5: #{run_tokenizer_kernel.1} parent=1 // pred_fallthru
      _
    // Predicated region
    $region6: #{run_tokenizer_kernel.1} parent=1 // pred_check
      _
    $region7: #{run_tokenizer_kernel.1} parent=1 // pred_check_branch
      %21 = sbr.rel (0) target = $region9
    $region8: #{run_tokenizer_kernel.1} parent=1 // pred_region
      %22 = dma.done [#allocation3], 128
    $region9: #{run_tokenizer_kernel.1} parent=1 // pred_fallthru
      _
    %v23 = vld [vmem:[#allocation2] sm:$0xf]
    %v24 = vld [vmem:[#allocation2 + $0x4] sm:$0xf]
    %v25 = vunpack.c.l.b16 %v23
    %v26 = vunpack.c.l.b16 %v24
    %vm27 = vcmp.lt.s32.totalorder %v25, 78
    %v28 = vsel %vm27, %v25, 78
    %vm29 = vcmp.lt.s32.totalorder %v26, 78
    %v30 = vsel %vm29, %v26, 78
    %v31 = vlaneseq
    %v32 = vand.u32 %v31, 127
    %vm33 = vcmp.eq.s32.totalorder %v32, 0
    %34 = vset.pattern.permute.xlu0 0
    %35 = vperm.xlu0 %34, %v28
    %v36 = vpop.permute.xlu0 %35
    %37 = vset.pattern.permute.xlu0 0
    %38 = vperm.xlu0 %37, %v30
    %v39 = vpop.permute.xlu0 %38
    %vm40 = vcmp.le.s32.totalorder %v32, %v36
    %vm41 = vcmp.le.s32.totalorder %v32, %v39
    %v42 = vadd.s32 %v28, 1
    %v43 = vadd.s32 %v30, 1
    %44 = vset.pattern.permute.xlu0 0
    %45 = vperm.xlu0 %44, %v42
    %v46 = vpop.permute.xlu0 %45
    %47 = vset.pattern.permute.xlu0 0
    %48 = vperm.xlu0 %47, %v43
    %v49 = vpop.permute.xlu0 %48
    %vm50 = vcmp.eq.s32.totalorder %v32, %v46
    %vm51 = vcmp.eq.s32.totalorder %v32, %v49
    %v52 = vsel %vm50, 2, 3
    %v53 = vsel %vm51, 2, 3
    %v54 = vsel %vm40, %v25, %v52
    %v55 = vsel %vm41, %v26, %v53
    %v56 = vsel %vm33, 1, %v54
    %v57 = vsel %vm33, 1, %v55
    %v58 = vpack.c.b16 %v56, %v56
    %v59 = vpack.c.b16 %v57, %v57
    %60 = vst [vmem:[#allocation5] sm:$0xf] %v58
    %61 = vst [vmem:[#allocation5 + $0x4] sm:$0xf] %v59
    // Predicated region
    $region10: #{run_tokenizer_kernel.1} parent=1 // pred_check
      _
    $region11: #{run_tokenizer_kernel.1} parent=1 // pred_check_branch
      %63 = sbr.rel (0) target = $region13
    $region12: #{run_tokenizer_kernel.1} parent=1 // pred_region
      %s65 = ssub.s32 128, 128
      %66 = vsyncadd [#allocation4], %s65
      %s67 = sshll.u32 [#allocation5], 4
      %s68 = int_to_ptr.vmem [resolvable:$true] %s67
      %73 = dma.vmem_to_hbm [thread:$0]  %s68, 128, %s1, [#allocation4], 64, 64, 4
    $region13: #{run_tokenizer_kernel.1} parent=1 // pred_fallthru
      _
    // Predicated region
    $region14: #{run_tokenizer_kernel.1} parent=1 // pred_check
      _
    $region15: #{run_tokenizer_kernel.1} parent=1 // pred_check_branch
      %75 = sbr.rel (0) target = $region17
    $region16: #{run_tokenizer_kernel.1} parent=1 // pred_region
      %76 = dma.done [#allocation4], 128
    $region17: #{run_tokenizer_kernel.1} parent=1 // pred_fallthru
      _
    %77 = vsyncpa [#allocation3], 1
    %78 = vsyncpa [#allocation4], 1

</llo_original>
